<compile_context>
chip_gen: v6e
topology: v6e:2x2x1
jax: 0.10.0
libtpu: 0.0.40
codegen_flags: <defaults>
</compile_context>

<pallas_src>
import random

import numpy as np
import jax
import jax.numpy as jnp
from jax import lax
from jax.experimental import pallas as pl
from jax.experimental.pallas import tpu as pltpu


_NEG_F32 = float(np.finfo(np.float32).min)   # "never wins the max" filler


def _round_up(x, m):
    return ((x + m - 1) // m) * m


def _next_pow2(x):
    x = int(x)
    return 1 if x <= 1 else 1 << (x - 1).bit_length()


# ----------------------------- Pallas kernel -----------------------------

def _make_max_agg_kernel(tn, tf, s_pad):
    """Kernel: each output row = running max over its gathered embedding rows.

    Rows are gathered one at a time with dynamic sublane slices because a
    vectorized sublane gather over a tall table is not an expressible Pallas
    lowering; this is the standard scalar-prefetch gather pattern and still
    does only N*S*tf work (vs. N*U*tf for the dense mask formulation).
    """

    def kernel(idx_ref, emb_ref, out_ref):
        # idx_ref : (n_pad * s_pad,) int32 in SMEM   (scalar prefetch)
        # emb_ref : (u_pad, tf)      float32 in VMEM (augmented embedding slab)
        # out_ref : (tn, tf)         float32
        base = pl.program_id(0) * (tn * s_pad)

        def row_body(r, carry):
            off = base + r * s_pad
            # Slot 0 initializes the running max; remaining slots hold either
            # real neighbor indices, the all-zero clamp row (torch's zero mask
            # columns), or the float32-min filler row (never wins the max).
            acc = emb_ref[pl.ds(idx_ref[off], 1), :]                 # (1, tf)
            for s in range(1, s_pad):                                # small & static
                acc = jnp.maximum(acc, emb_ref[pl.ds(idx_ref[off + s], 1), :])
            out_ref[pl.ds(r, 1), :] = acc
            return carry

        lax.fori_loop(0, tn, row_body, 0)

    return kernel


def max_aggregate(embed_matrix, neighbor_idx):
    """to_feats[i, f] = max_j mask[i, j] * embed_matrix[j, f] (torch MaxAggregator).

    embed_matrix : (U, F) float32 embeddings of the unique sampled neighbors.
    neighbor_idx : length-N list; neighbor_idx[i] = iterable of indices into
                   embed_matrix for node i's sampled neighbors (may be empty).
    Returns (N, F) float32.
    """
    emb = jnp.asarray(embed_matrix, jnp.float32)
    U, F = emb.shape
    N = len(neighbor_idx)
    if N == 0:
        return jnp.zeros((0, F), jnp.float32)
    if U == 0:
        # Every sampled neighbor set is empty -> all-zero mask -> zero output.
        # (Also guards the kernel against an empty embedding slab.)
        return jnp.zeros((N, F), jnp.float32)

    zero_row = U        # all-zero row: encodes the clamp-at-0 of mask zeros
    neg_row = U + 1     # float32-min row: padding that can never win the max

    # --- bucketed padded sizes (stable across batches -> one compile/bucket) --
    u_pad = max(8, _next_pow2(U + 2))
    max_deg = max(len(nb) for nb in neighbor_idx)
    s_pad = _round_up(max_deg + 1, 8)            # +1 slot for the clamp row
    tn = min(128, _round_up(N, 8))               # row tile (multiple of 8)
    n_pad = _round_up(N, tn)
    f128 = _round_up(F, 128)
    tf = 512                                     # lane-dense feature tile
    while tf > 128 and 2 * u_pad * tf * 4 > (8 << 20):
        tf //= 2                                 # keep dbl-buffered slab small
    tf = min(tf, f128)
    f_pad = _round_up(f128, tf)
    # TODO(synk): for very large U (u_pad * tf * 8 B >> scoped VMEM) the
    # embedding slab would also need tiling over U; not needed at these sizes.

    # --- per-node neighbor index table, built directly in numpy (int32) ------
    idx = np.full((n_pad, s_pad), neg_row, dtype=np.int32)
    for i, nb in enumerate(neighbor_idx):
        d = len(nb)
        if d:
            idx[i, :d] = np.fromiter(nb, dtype=np.int32, count=d)
        if d < U:                                # mask row i has a zero column
            idx[i, d] = zero_row                 # -> clamp its max at 0
    idx_flat = jnp.asarray(idx.reshape(-1))      # 1-D -> compact SMEM layout

    # --- augmented, padded embedding slab (stays on device) -------------------
    emb_aug = jnp.full((u_pad, f_pad), _NEG_F32, dtype=jnp.float32)
    emb_aug = emb_aug.at[zero_row, :].set(0.0)
    emb_aug = emb_aug.at[:U, :F].set(emb)

    grid = (n_pad // tn, f_pad // tf)
    out = pl.pallas_call(
        _make_max_agg_kernel(tn, tf, s_pad),
        out_shape=jax.ShapeDtypeStruct((n_pad, f_pad), jnp.float32),
        grid_spec=pltpu.PrefetchScalarGridSpec(
            num_scalar_prefetch=1,               # idx_flat -> SMEM
            grid=grid,
            in_specs=[
                # full augmented embedding slab for the current feature tile
                pl.BlockSpec((u_pad, tf), lambda i, j, idx_ref: (0, j)),
            ],
            out_specs=pl.BlockSpec((tn, tf), lambda i, j, idx_ref: (i, j)),
        ),
        compiler_params=pltpu.CompilerParams(
            dimension_semantics=("parallel", "parallel")),
    )(idx_flat, emb_aug)

    return out[:N, :F]


# --------------------------- Host-side "module" ---------------------------

class MaxAggregatorJAX:
    """JAX/Pallas port of the GraphSAGE MaxAggregator forward pass."""

    def __init__(self, embedding_table, gcn=False):
        # `features` in the torch module is an embedding lookup; here it is a
        # dense table + jnp.take (host/XLA glue, as in torch).
        self.embedding_table = jnp.asarray(embedding_table, jnp.float32)
        self.gcn = gcn
        self.last_samp_neighs = None   # exposed for deterministic testing

    def forward(self, nodes, to_neighs, num_sample=10):
        # --- neighbor sampling / dedup (pure Python glue, as in torch) ---
        if num_sample is not None:
            samp_neighs = [
                set(random.sample(sorted(to_neigh), num_sample))
                if len(to_neigh) >= num_sample else set(to_neigh)
                for to_neigh in to_neighs
            ]
        else:
            samp_neighs = [set(tn_) for tn_ in to_neighs]
        if self.gcn:
            samp_neighs = [
                set.union(sn, {nodes[i]}) for i, sn in enumerate(samp_neighs)
            ]
        self.last_samp_neighs = samp_neighs

        N = len(samp_neighs)
        F = self.embedding_table.shape[1]
        if N == 0:
            return jnp.zeros((0, F), jnp.float32)

        unique_nodes_list = list(set.union(*samp_neighs)) if samp_neighs else []
        unique_nodes = {n: i for i, n in enumerate(unique_nodes_list)}
        if len(unique_nodes_list) == 0:
            # All sampled neighbor sets empty: the torch masked max degenerates
            # to all zeros; guard so the kernel grid is never empty.
            return jnp.zeros((N, F), jnp.float32)

        # --- embedding lookup for the unique sampled neighbors (glue) ---
        embed_matrix = jnp.take(
            self.embedding_table,
            jnp.asarray(unique_nodes_list, dtype=jnp.int32),
            axis=0,
        )

        # --- per-node neighbor indices (replaces the dense 0/1 mask) ---
        neighbor_idx = [[unique_nodes[n] for n in sn] for sn in samp_neighs]

        # --- hot path: masked max aggregation (Pallas kernel) ---
        return max_aggregate(embed_matrix, neighbor_idx)


# --------------------------------- main ----------------------------------

if __name__ == "__main__":
    random.seed(0)
    np.random.seed(0)

    num_total_nodes = 40
    feat_dim = 32
    batch_nodes = 10
    num_sample = 5

    # Deterministic embedding table (stands in for self.features).
    key = jax.random.PRNGKey(0)
    embedding_table = jax.random.normal(
        key, (num_total_nodes, feat_dim), dtype=jnp.float32)

    # Deterministic synthetic adjacency lists.
    nodes = list(range(batch_nodes))
    to_neighs = []
    for i in nodes:
        deg = 3 + (i % 6)  # degrees 3..8, some >= num_sample
        neigh = {(i * 7 + 3 * j + 1) % num_total_nodes for j in range(deg)}
        neigh.discard(i)
        to_neighs.append(neigh)
    to_neighs[3] = set()   # exercise the empty-neighborhood (all-zero row) path

    agg = MaxAggregatorJAX(embedding_table, gcn=False)
    out = jax.block_until_ready(agg.forward(nodes, to_neighs, num_sample=num_sample))

    # Silent correctness check vs. the literal torch loop, replayed on the
    # exact sampled neighbor sets the forward pass used (no RNG fragility).
    samp_neighs = agg.last_samp_neighs
    unique_nodes_list = list(set.union(*samp_neighs))
    unique_nodes = {n: i for i, n in enumerate(unique_nodes_list)}
    mask_np = np.zeros((len(samp_neighs), len(unique_nodes_list)), dtype=np.float32)
    for i, sn in enumerate(samp_neighs):
        for n in sn:
            mask_np[i, unique_nodes[n]] = 1.0
    emb_np = np.asarray(embedding_table)[np.asarray(unique_nodes_list)]
    ref = np.zeros((mask_np.shape[0], feat_dim), dtype=np.float32)
    for i in range(mask_np.shape[0]):
        mid = mask_np[i] * emb_np.T            # (F, U)
        ref[i] = mid.max(axis=1)
    np.testing.assert_allclose(np.asarray(out), ref, rtol=1e-6, atol=1e-6)

    print("KERNEL_OK")
</pallas_src>

<mosaic_0001>
module attributes {stable_mosaic.version = 11 : i64} {
  func.func @kernel(%arg0: i32, %arg1: i32, %arg2: memref<128xi32, #tpu.memory_space<smem>>, %arg3: memref<32x128xf32, #tpu.memory_space<vmem>>, %arg4: memref<16x128xf32, #tpu.memory_space<vmem>>) attributes {dimension_semantics = [#tpu.dimension_semantics<parallel>, #tpu.dimension_semantics<parallel>], iteration_bounds = array<i64: 1, 1>, scalar_prefetch = 1 : i64, scratch_operands = 0 : i64, tpu.core_type = #tpu.core_type<tc>, window_params = [{transform_indices = @transform_0, window_bounds = array<i64: 32, 128>}, {transform_indices = @transform_1, window_bounds = array<i64: 16, 128>}]} {
    %c128_i32 = arith.constant 128 : i32
    %0 = arith.muli %arg0, %c128_i32 : i32
    %c0_i32 = arith.constant 0 : i32
    %c16_i32 = arith.constant 16 : i32
    %1 = arith.addi %c0_i32, %c16_i32 : i32
    %c1_i32 = arith.constant 1 : i32
    scf.for %arg5 = %c0_i32 to %1 step %c1_i32  : i32 {
      %c8_i32 = arith.constant 8 : i32
      %2 = arith.muli %arg5, %c8_i32 : i32
      %3 = arith.addi %0, %2 : i32
      %4 = arith.index_cast %3 : i32 to index
      %5 = memref.load %arg2[%4] : memref<128xi32, #tpu.memory_space<smem>>
      %6 = arith.index_cast %5 : i32 to index
      %c0 = arith.constant 0 : index
      %7 = vector.load %arg3[%6, %c0] : memref<32x128xf32, #tpu.memory_space<vmem>>, vector<1x128xf32>
      %c1_i32_1 = arith.constant 1 : i32
      %8 = arith.addi %3, %c1_i32_1 : i32
      %9 = arith.index_cast %8 : i32 to index
      %10 = memref.load %arg2[%9] : memref<128xi32, #tpu.memory_space<smem>>
      %11 = arith.index_cast %10 : i32 to index
      %c0_2 = arith.constant 0 : index
      %12 = vector.load %arg3[%11, %c0_2] : memref<32x128xf32, #tpu.memory_space<vmem>>, vector<1x128xf32>
      %13 = arith.maximumf %7, %12 : vector<1x128xf32>
      %c2_i32 = arith.constant 2 : i32
      %14 = arith.addi %3, %c2_i32 : i32
      %15 = arith.index_cast %14 : i32 to index
      %16 = memref.load %arg2[%15] : memref<128xi32, #tpu.memory_space<smem>>
      %17 = arith.index_cast %16 : i32 to index
      %c0_3 = arith.constant 0 : index
      %18 = vector.load %arg3[%17, %c0_3] : memref<32x128xf32, #tpu.memory_space<vmem>>, vector<1x128xf32>
      %19 = arith.maximumf %13, %18 : vector<1x128xf32>
      %c3_i32 = arith.constant 3 : i32
      %20 = arith.addi %3, %c3_i32 : i32
      %21 = arith.index_cast %20 : i32 to index
      %22 = memref.load %arg2[%21] : memref<128xi32, #tpu.memory_space<smem>>
      %23 = arith.index_cast %22 : i32 to index
      %c0_4 = arith.constant 0 : index
      %24 = vector.load %arg3[%23, %c0_4] : memref<32x128xf32, #tpu.memory_space<vmem>>, vector<1x128xf32>
      %25 = arith.maximumf %19, %24 : vector<1x128xf32>
      %c4_i32 = arith.constant 4 : i32
      %26 = arith.addi %3, %c4_i32 : i32
      %27 = arith.index_cast %26 : i32 to index
      %28 = memref.load %arg2[%27] : memref<128xi32, #tpu.memory_space<smem>>
      %29 = arith.index_cast %28 : i32 to index
      %c0_5 = arith.constant 0 : index
      %30 = vector.load %arg3[%29, %c0_5] : memref<32x128xf32, #tpu.memory_space<vmem>>, vector<1x128xf32>
      %31 = arith.maximumf %25, %30 : vector<1x128xf32>
      %c5_i32 = arith.constant 5 : i32
      %32 = arith.addi %3, %c5_i32 : i32
      %33 = arith.index_cast %32 : i32 to index
      %34 = memref.load %arg2[%33] : memref<128xi32, #tpu.memory_space<smem>>
      %35 = arith.index_cast %34 : i32 to index
      %c0_6 = arith.constant 0 : index
      %36 = vector.load %arg3[%35, %c0_6] : memref<32x128xf32, #tpu.memory_space<vmem>>, vector<1x128xf32>
      %37 = arith.maximumf %31, %36 : vector<1x128xf32>
      %c6_i32 = arith.constant 6 : i32
      %38 = arith.addi %3, %c6_i32 : i32
      %39 = arith.index_cast %38 : i32 to index
      %40 = memref.load %arg2[%39] : memref<128xi32, #tpu.memory_space<smem>>
      %41 = arith.index_cast %40 : i32 to index
      %c0_7 = arith.constant 0 : index
      %42 = vector.load %arg3[%41, %c0_7] : memref<32x128xf32, #tpu.memory_space<vmem>>, vector<1x128xf32>
      %43 = arith.maximumf %37, %42 : vector<1x128xf32>
      %c7_i32 = arith.constant 7 : i32
      %44 = arith.addi %3, %c7_i32 : i32
      %45 = arith.index_cast %44 : i32 to index
      %46 = memref.load %arg2[%45] : memref<128xi32, #tpu.memory_space<smem>>
      %47 = arith.index_cast %46 : i32 to index
      %c0_8 = arith.constant 0 : index
      %48 = vector.load %arg3[%47, %c0_8] : memref<32x128xf32, #tpu.memory_space<vmem>>, vector<1x128xf32>
      %49 = arith.maximumf %43, %48 : vector<1x128xf32>
      %50 = arith.index_cast %arg5 : i32 to index
      %c0_9 = arith.constant 0 : index
      %51 = vector.load %arg4[%50, %c0_9] : memref<16x128xf32, #tpu.memory_space<vmem>>, vector<1x128xf32>
      tpu.vector_store %arg4[%50, %c0_9], %49 {strides = array<i32>} : memref<16x128xf32, #tpu.memory_space<vmem>>, vector<1x128xf32>,
    }
    %c16_i32_0 = arith.constant 16 : i32
    return
  }
  func.func @transform_0(%arg0: i32, %arg1: i32, %arg2: memref<128xi32, #tpu.memory_space<smem>>) -> (i32, i32) {
    %c0_i32 = arith.constant 0 : i32
    %c0_i32_0 = arith.constant 0 : i32
    return %c0_i32, %arg1 : i32, i32
  }
  func.func @transform_1(%arg0: i32, %arg1: i32, %arg2: memref<128xi32, #tpu.memory_space<smem>>) -> (i32, i32) {
    %c0_i32 = arith.constant 0 : i32
    return %arg0, %arg1 : i32, i32
  }
}

</mosaic_0001>

<llo_original>
// kernel: tpu_custom_call.1
$region0: #{tpu_custom_call.1}
  #allocation0 [shape = 'u32[]', space=smem, size = 0x4, offset = 0x4, fixed_abs, tag = 'smem constant byte address 0x4 - core index']
  #allocation1 [shape = 'u32[144,128]{1,0:T(1,128)}', space=vmem, size = 0x12000, scoped, tag = 'internal scratch']
  #allocation2 [shape = 's32[1]{0}', space=sflag, size = 0x4, scoped, tag = 'scoped memory for tpu_custom_call.1']
  #allocation3 [shape = 'u8[512]{0}', space=smem, size = 0x200, scoped, tag = 'prefetched SMEM operand 0']
  %s0 = inlined_call_operand.hbm [shape: s32[128], index: 0, kind: input, shape index: {}]
  %s1 = inlined_call_operand.hbm [shape: f32[32,128], index: 1, kind: input, shape index: {}]
  %s2 = inlined_call_operand.hbm [shape: f32[16,128], index: 2, kind: output, shape index: {}]
  %s3 = sld [smem:[#allocation0]]
  $region25: #{tpu_custom_call.1} parent=0
    _
  %s5 = ssub.s32 1, %s3
  %s6 = scalar_select 0, %s5, %s3
  %8 = dma.hbm_to_smem %s0, 16, [#allocation3], [#allocation2]
  %9 = dma.done [#allocation2], 16
  %10 = sfence
  $region1: #{tpu_custom_call.1} parent=0
    #allocation4 [shape = 'u8[16384]{0}', space=vmem, size = 0x4000, scoped, tag = 'input window, operand 1, single buffered']
    #allocation5 [shape = 's32[1]{0}', space=sflag, size = 0x4, scoped, tag = 'scoped memory for tpu_custom_call.1']
    #allocation6 [shape = 's32[1]{0}', space=sflag, size = 0x4, scoped, tag = 'scoped memory for tpu_custom_call.1']
    #allocation7 [shape = 'u8[8192]{0}', space=vmem, size = 0x2000, scoped, tag = 'output window, operand 0, single buffered']
    %11 = vsyncpa [#allocation5], 0
    %12 = vsyncpa [#allocation6], 0
    // Predicated region
    $region2: #{tpu_custom_call.1} parent=1 // pred_check
      _
    $region3: #{tpu_custom_call.1} parent=1 // pred_check_branch
      %14 = sbr.rel (0) target = $region5
    $region4: #{tpu_custom_call.1} parent=1 // pred_region
      %s16 = ssub.s32 512, 512
      %17 = vsyncadd [#allocation5], %s16
      %s18 = sshll.u32 [#allocation4], 4
      %s19 = int_to_ptr.vmem [resolvable:$true] %s18
      %24 = dma.hbm_to_vmem [thread:$0]  %s1, 512, %s19, [#allocation5], 128, 128, 8
    $region5: #{tpu_custom_call.1} parent=1 // pred_fallthru
      _
    // Predicated region
    $region6: #{tpu_custom_call.1} parent=1 // pred_check
      _
    $region7: #{tpu_custom_call.1} parent=1 // pred_check_branch
      %26 = sbr.rel (0) target = $region9
    $region8: #{tpu_custom_call.1} parent=1 // pred_region
      %27 = dma.done [#allocation5], 512
    $region9: #{tpu_custom_call.1} parent=1 // pred_fallthru
      _
    %s28 = smul.u32 0, 128
    loop: start=0, step=1, limit=16
    $region10: #{tpu_custom_call.1} parent=1 // loop_pre_header
      _
    $region11: #{tpu_custom_call.1} parent=1 // loop_header
      %s30 = sphi 0, %s34
      %p31 = scmp.ge.s32.totalorder %s30, 16
    $region12: #{tpu_custom_call.1} parent=1 // loop_header_branch
      %33 = sbr.rel (%p31) target = $region16
    $region13: #{tpu_custom_call.1} parent=1 // loop_body
      %s35 = smul.u32 %s30, 8
      %s36 = sadd.s32 %s28, %s35
      %s37 = sld [smem:[#allocation3 + %s36]]
      %s38 = scalar_lea.vmem [#allocation4], %s37
      %v39 = vld [vmem:[%s38] sm:$0x1]
      %s40 = sadd.s32 %s36, 1
      %s41 = sld [smem:[#allocation3 + %s40]]
      %s42 = scalar_lea.vmem [#allocation4], %s41
      %v43 = vld [vmem:[%s42] sm:$0x1]
      %v44 = vmax.f32 %v39, %v43
      %s45 = sadd.s32 %s36, 2
      %s46 = sld [smem:[#allocation3 + %s45]]
      %s47 = scalar_lea.vmem [#allocation4], %s46
      %v48 = vld [vmem:[%s47] sm:$0x1]
      %v49 = vmax.f32 %v44, %v48
      %s50 = sadd.s32 %s36, 3
      %s51 = sld [smem:[#allocation3 + %s50]]
      %s52 = scalar_lea.vmem [#allocation4], %s51
      %v53 = vld [vmem:[%s52] sm:$0x1]
      %v54 = vmax.f32 %v49, %v53
      %s55 = sadd.s32 %s36, 4
      %s56 = sld [smem:[#allocation3 + %s55]]
      %s57 = scalar_lea.vmem [#allocation4], %s56
      %v58 = vld [vmem:[%s57] sm:$0x1]
      %v59 = vmax.f32 %v54, %v58
      %s60 = sadd.s32 %s36, 5
      %s61 = sld [smem:[#allocation3 + %s60]]
      %s62 = scalar_lea.vmem [#allocation4], %s61
      %v63 = vld [vmem:[%s62] sm:$0x1]
      %v64 = vmax.f32 %v59, %v63
      %s65 = sadd.s32 %s36, 6
      %s66 = sld [smem:[#allocation3 + %s65]]
      %s67 = scalar_lea.vmem [#allocation4], %s66
      %v68 = vld [vmem:[%s67] sm:$0x1]
      %v69 = vmax.f32 %v64, %v68
      %s70 = sadd.s32 %s36, 7
      %s71 = sld [smem:[#allocation3 + %s70]]
      %s72 = scalar_lea.vmem [#allocation4], %s71
      %v73 = vld [vmem:[%s72] sm:$0x1]
      %v74 = vmax.f32 %v69, %v73
      %s75 = scalar_lea.vmem [#allocation7], %s30
      %76 = vst [vmem:[%s75] sm:$0x1] %v74
    $region14: #{tpu_custom_call.1} parent=1 // loop_footer
      %s34 = sadd.s32 1, %s30
    $region15: #{tpu_custom_call.1} parent=1 // loop_footer_branch
      %29 = sbr.rel target = $region11
    $region16: #{tpu_custom_call.1} parent=1 // loop_exit
      _
    // Predicated region
    $region17: #{tpu_custom_call.1} parent=1 // pred_check
      _
    $region18: #{tpu_custom_call.1} parent=1 // pred_check_branch
      %78 = sbr.rel (0) target = $region20
    $region19: #{tpu_custom_call.1} parent=1 // pred_region
      %s80 = ssub.s32 256, 256
      %81 = vsyncadd [#allocation6], %s80
      %s82 = sshll.u32 [#allocation7], 4
      %s83 = int_to_ptr.vmem [resolvable:$true] %s82
      %88 = dma.vmem_to_hbm [thread:$0]  %s83, 256, %s2, [#allocation6], 128, 128, 8
    $region20: #{tpu_custom_call.1} parent=1 // pred_fallthru
      _
    // Predicated region
    $region21: #{tpu_custom_call.1} parent=1 // pred_check
      _
    $region22: #{tpu_custom_call.1} parent=1 // pred_check_branch
      %90 = sbr.rel (0) target = $region24
    $region23: #{tpu_custom_call.1} parent=1 // pred_region
      %91 = dma.done [#allocation6], 256
    $region24: #{tpu_custom_call.1} parent=1 // pred_fallthru
      _
    %92 = vsyncpa [#allocation5], 1
    %93 = vsyncpa [#allocation6], 1

</llo_original>
